<compile_context>
chip_gen: v5e
topology: v5e:2x2
jax: 0.10.0
libtpu: 0.0.40
codegen_flags: <defaults>
</compile_context>

<pallas_src>
import functools

import jax
import jax.numpy as jnp
from jax.experimental import pallas as pl
from jax.experimental.pallas import tpu as pltpu


def _round_up(n, m):
    return ((n + m - 1) // m) * m


def _maybe_pad2(a, rows, cols):
    """Zero-pad a 2-D array up to (rows, cols); no-op copy avoided if aligned."""
    pr, pc = rows - a.shape[0], cols - a.shape[1]
    if pr == 0 and pc == 0:
        return a
    return jnp.pad(a, ((0, pr), (0, pc)))


def _pick_wr_chunk(Cp, n_j):
    """Smallest multiple of 128 that divides Cp with Cp//chunk <= n_j steps."""
    m = Cp // 128
    for d in range(1, m + 1):
        if m % d == 0 and (m // d) <= n_j:
            return 128 * d
    return Cp


def _auto_config():
    """(tm, vmem_limit_bytes) sized per TPU generation's VMEM capacity."""
    cap = 128 * 1024 * 1024
    try:
        cap = int(pltpu.get_tpu_info().vmem_capacity_bytes)
    except Exception:
        pass
    if cap >= 96 * 1024 * 1024:          # v5e / v6e: 128 MiB VMEM
        return 512, min(int(cap * 0.85), 112 * 1024 * 1024)
    # v7x: 64 MiB per TensorCore -> smaller row tile, tighter budget
    return 256, min(int(cap * 0.8), 56 * 1024 * 1024)


def prepare_cmix_weights(w_key, w_receptance, w_value, *, tf=512,
                         weight_dtype=jnp.bfloat16):
    """One-time weight relayout (do this at model-load time, not per forward).

    w_key:        (F, C)   nn.Linear(C, F).weight
    w_receptance: (C, C)   nn.Linear(C, C).weight
    w_value:      (C, F)   nn.Linear(F, C).weight
    tf:           FFN reduction tile (multiple of 128).
    """
    F, C = w_key.shape
    assert w_receptance.shape == (C, C) and w_value.shape == (C, F)
    Cp = _round_up(C, 128)
    tf_eff = min(_round_up(tf, 128), _round_up(F, 128))
    Fp = _round_up(F, tf_eff)
    wk_t = _maybe_pad2(w_key, Fp, Cp).T.astype(weight_dtype)         # (Cp, Fp)
    wr_t = _maybe_pad2(w_receptance, Cp, Cp).T.astype(weight_dtype)  # (Cp, Cp)
    wv_t = _maybe_pad2(w_value, Cp, Fp).T.astype(weight_dtype)       # (Fp, Cp)
    return {"wk_t": wk_t, "wr_t": wr_t, "wv_t": wv_t,
            "tf": int(tf_eff), "C": int(C), "F": int(F)}


def _cmix_kernel(x_ref, xprev_ref, maa_k_ref, maa_r_ref,
                 wk_ref, wr_ref, wv_ref, o_ref,
                 xk_ref, xr_ref, kv_acc_ref, r_acc_ref, *, n_wr, tr):
    # Grid: (row_tiles, ffn_tiles).  j is the FFN reduction step.
    j = pl.program_id(1)

    @pl.when(j == 0)
    def _init():
        # Token-mix hoisted: computed once per row tile, reused for every j.
        # Elementwise math in f32 (v5e VPU/EUP have no bf16 path); MXU
        # operands are stored to scratch in the weight dtype (bf16).
        x = x_ref[...].astype(jnp.float32)
        xx = xprev_ref[...].astype(jnp.float32) - x
        xk_ref[...] = (x + xx * maa_k_ref[...]).astype(xk_ref.dtype)
        xr_ref[...] = (x + xx * maa_r_ref[...]).astype(xr_ref.dtype)
        kv_acc_ref[...] = jnp.zeros_like(kv_acc_ref)

    # key / value path: reduce over the FFN dim in tf-wide chunks.
    k = jnp.dot(xk_ref[...], wk_ref[...], preferred_element_type=jnp.float32)
    k = jnp.maximum(k, 0.0)
    k = k * k                                                 # relu(k)**2, f32
    kv_acc_ref[...] += jnp.dot(k.astype(wv_ref.dtype), wv_ref[...],
                               preferred_element_type=jnp.float32)

    # receptance path: wr streamed as column chunks over the first n_wr steps;
    # each step fills one (tm, tr) slice of r (no VMEM-resident wr).
    @pl.when(j < n_wr)
    def _receptance_chunk():
        r_acc_ref[j] = jnp.dot(xr_ref[...], wr_ref[...],
                               preferred_element_type=jnp.float32)

    @pl.when(j == pl.num_programs(1) - 1)
    def _finalize():
        kv = kv_acc_ref[...]
        for w in range(n_wr):                       # static unroll, lane-aligned
            cols = slice(w * tr, (w + 1) * tr)
            o_ref[:, cols] = (jax.nn.sigmoid(r_acc_ref[w]) * kv[:, cols]
                              ).astype(o_ref.dtype)


@functools.partial(jax.jit,
                   static_argnames=("tf", "tm", "vmem_limit_bytes", "out_dtype"))
def _cmix_forward(x, shift_state, time_maa_k, time_maa_r, wk_t, wr_t, wv_t,
                  *, tf, tm, vmem_limit_bytes, out_dtype):
    B, T, C = x.shape
    Cp, Fp = wk_t.shape
    assert wr_t.shape == (Cp, Cp) and wv_t.shape == (Fp, Cp)
    assert Fp % tf == 0
    M = B * T
    n_j = Fp // tf

    tm_eff = min(tm, _round_up(M, 8))
    Mp = _round_up(M, tm_eff)
    tr = _pick_wr_chunk(Cp, n_j)          # receptance column-chunk width
    n_wr = Cp // tr

    # bf16 activation streams (in-kernel elementwise math stays f32).
    stream_dtype = jnp.bfloat16 if x.dtype == jnp.float32 else x.dtype
    xs = x.astype(stream_dtype)
    # TODO(synk): fold the time-shift into the kernel (roll + halo fixup) and
    # drop this concat / the xprev HBM stream entirely.
    xprev = jnp.concatenate(
        [shift_state.astype(stream_dtype)[:, None, :], xs[:, :-1, :]], axis=1)

    x2 = _maybe_pad2(xs.reshape(M, C), Mp, Cp)
    xprev2 = _maybe_pad2(xprev.reshape(M, C), Mp, Cp)
    maa_k = _maybe_pad2(time_maa_k.reshape(1, C).astype(jnp.float32), 1, Cp)
    maa_r = _maybe_pad2(time_maa_r.reshape(1, C).astype(jnp.float32), 1, Cp)

    grid = (Mp // tm_eff, n_j)            # reduction (FFN) axis last
    n_row_tiles = grid[0]

    if n_wr == n_j:
        wr_index = lambda i, j: (0, j)
    else:  # park the chunk index once all receptance columns are produced
        wr_index = lambda i, j: (0, jnp.minimum(j, jnp.int32(n_wr - 1)))

    wbytes = jnp.dtype(wk_t.dtype).itemsize
    flops = 2 * Mp * (Cp * Fp + Fp * Cp + Cp * Cp)   # key + value + receptance
    bytes_accessed = int(
        (x2.size + xprev2.size) * jnp.dtype(stream_dtype).itemsize
        + Mp * Cp * jnp.dtype(out_dtype).itemsize
        + (wk_t.size + wv_t.size + wr_t.size) * wbytes * n_row_tiles)
    cost = pl.CostEstimate(flops=int(flops), transcendentals=int(Mp * Cp),
                           bytes_accessed=bytes_accessed)

    kernel = functools.partial(_cmix_kernel, n_wr=n_wr, tr=tr)

    out2 = pl.pallas_call(
        kernel,
        out_shape=jax.ShapeDtypeStruct((Mp, Cp), out_dtype),
        grid_spec=pltpu.PrefetchScalarGridSpec(
            num_scalar_prefetch=0,
            grid=grid,
            in_specs=[
                pl.BlockSpec((tm_eff, Cp), lambda i, j: (i, 0)),   # x rows
                pl.BlockSpec((tm_eff, Cp), lambda i, j: (i, 0)),   # shifted rows
                pl.BlockSpec((1, Cp), lambda i, j: (0, 0)),        # time_maa_k
                pl.BlockSpec((1, Cp), lambda i, j: (0, 0)),        # time_maa_r
                pl.BlockSpec((Cp, tf), lambda i, j: (0, j)),       # key^T chunk
                pl.BlockSpec((Cp, tr), wr_index),                  # recept^T col chunk
                pl.BlockSpec((tf, Cp), lambda i, j: (j, 0)),       # value^T chunk
            ],
            out_specs=pl.BlockSpec((tm_eff, Cp), lambda i, j: (i, 0)),
            scratch_shapes=[
                pltpu.VMEM((tm_eff, Cp), wk_t.dtype),          # xk (hoisted mix)
                pltpu.VMEM((tm_eff, Cp), wr_t.dtype),          # xr (hoisted mix)
                pltpu.VMEM((tm_eff, Cp), jnp.float32),         # kv accumulator
                pltpu.VMEM((n_wr, tm_eff, tr), jnp.float32),   # r column chunks
            ],
        ),
        compiler_params=pltpu.CompilerParams(
            # rows shard across TensorCores (v7x megacore); FFN axis is the
            # reduction -> "arbitrary" keeps the accumulators resident.
            dimension_semantics=("parallel", "arbitrary"),
            vmem_limit_bytes=vmem_limit_bytes,
        ),
        cost_estimate=cost,
    )(x2, xprev2, maa_k, maa_r, wk_t, wr_t, wv_t)

    out = out2 if (Mp == M and Cp == C) else out2[:M, :C]
    out = out.reshape(B, T, C)
    new_shift_state = x[:, -1, :]          # ChannelMixState(x[:, -1])
    return out, new_shift_state


def rwkv_cmix_x060_infctx_prepared(x, shift_state, time_maa_k, time_maa_r,
                                   weights, *, tm=None, out_dtype=None,
                                   vmem_limit_bytes=None):
    """Forward using weights already laid out by `prepare_cmix_weights`."""
    auto_tm, auto_vmem = _auto_config()
    tm = auto_tm if tm is None else int(tm)
    vmem_limit_bytes = auto_vmem if vmem_limit_bytes is None else int(vmem_limit_bytes)
    out_dtype = jnp.dtype(x.dtype) if out_dtype is None else jnp.dtype(out_dtype)
    return _cmix_forward(x, shift_state, time_maa_k, time_maa_r,
                         weights["wk_t"], weights["wr_t"], weights["wv_t"],
                         tf=weights["tf"], tm=tm,
                         vmem_limit_bytes=vmem_limit_bytes, out_dtype=out_dtype)


def rwkv_cmix_x060_infctx(x, shift_state, time_maa_k, time_maa_r,
                          w_key, w_receptance, w_value, *, tf=512, tm=None,
                          out_dtype=None):
    """Convenience wrapper taking raw PyTorch-layout weights.

    NOTE: this re-lays-out the weights on every call; in real inference loops
    call `prepare_cmix_weights` once and use `rwkv_cmix_x060_infctx_prepared`.
    """
    weights = prepare_cmix_weights(w_key, w_receptance, w_value, tf=tf)
    return rwkv_cmix_x060_infctx_prepared(x, shift_state, time_maa_k,
                                          time_maa_r, weights, tm=tm,
                                          out_dtype=out_dtype)


def _reference(x, shift_state, maa_k, maa_r, wk, wr, wv):
    """Pure-JAX f32 reference mirroring the PyTorch forward."""
    xprev = jnp.concatenate([shift_state[:, None, :], x[:, :-1, :]], axis=1)
    xx = xprev - x
    xk = x + xx * maa_k
    xr = x + xx * maa_r
    k = jnp.maximum(xk @ wk.T, 0.0) ** 2
    kv = k @ wv.T
    return jax.nn.sigmoid(xr @ wr.T) * kv, x[:, -1, :]


if __name__ == "__main__":
    # ---------- Case 1: module-like small shapes (n_embd=32, dim_ffn=64). ----
    B, T = 2, 8
    n_embd, dim_ffn = 32, 64
    n_layer, layer_id = 4, 1

    key = jax.random.PRNGKey(0)
    kx, ks, kk, kr, kv = jax.random.split(key, 5)

    x = jax.random.normal(kx, (B, T, n_embd), dtype=jnp.float32)
    shift_state = jax.random.normal(ks, (B, n_embd), dtype=jnp.float32)

    ratio_1_to_almost0 = 1.0 - layer_id / n_layer
    ddd = (jnp.arange(n_embd, dtype=jnp.float32) / n_embd).reshape(1, 1, n_embd)
    time_maa_k = 1.0 - jnp.power(ddd, ratio_1_to_almost0)
    time_maa_r = 1.0 - jnp.power(ddd, ratio_1_to_almost0)

    w_key = jax.random.normal(kk, (dim_ffn, n_embd), dtype=jnp.float32) * 0.05
    w_receptance = jax.random.normal(kr, (n_embd, n_embd), dtype=jnp.float32) * 0.05
    w_value = jax.random.normal(kv, (n_embd, dim_ffn), dtype=jnp.float32) * 0.05

    weights = prepare_cmix_weights(w_key, w_receptance, w_value)  # one-time
    out, new_state = rwkv_cmix_x060_infctx_prepared(
        x, shift_state, time_maa_k, time_maa_r, weights)
    out = jax.block_until_ready(out)
    new_state = jax.block_until_ready(new_state)

    ref_out, ref_state = _reference(
        x, shift_state, time_maa_k, time_maa_r, w_key, w_receptance, w_value)
    err1 = float(jnp.max(jnp.abs(out - ref_out)))
    # bf16 streams + bf16 MXU operands (f32 accumulation) vs f32 reference.
    assert jnp.allclose(out, ref_out, atol=3e-2, rtol=3e-2), err1
    assert jnp.allclose(new_state, ref_state)

    # Convenience (raw-weight) wrapper gives the same result.
    out_c, _ = rwkv_cmix_x060_infctx(x, shift_state, time_maa_k, time_maa_r,
                                     w_key, w_receptance, w_value)
    assert jnp.allclose(jax.block_until_ready(out_c), ref_out,
                        atol=3e-2, rtol=3e-2)

    # ---------- Case 2: multi-step FFN reduction + streamed receptance ------
    # (exercises n_j=3 > n_wr=2 -> clamped wr chunk index, ragged row padding).
    B2, T2, C2, F2 = 1, 12, 256, 384
    k2 = jax.random.split(jax.random.PRNGKey(1), 7)
    x_b = jax.random.normal(k2[0], (B2, T2, C2), dtype=jnp.float32)
    ss_b = jax.random.normal(k2[1], (B2, C2), dtype=jnp.float32)
    maa_k_b = jax.random.uniform(k2[2], (1, 1, C2), dtype=jnp.float32)
    maa_r_b = jax.random.uniform(k2[3], (1, 1, C2), dtype=jnp.float32)
    wk_b = jax.random.normal(k2[4], (F2, C2), dtype=jnp.float32) * 0.02
    wr_b = jax.random.normal(k2[5], (C2, C2), dtype=jnp.float32) * 0.02
    wv_b = jax.random.normal(k2[6], (C2, F2), dtype=jnp.float32) * 0.02

    weights_b = prepare_cmix_weights(wk_b, wr_b, wv_b, tf=128)
    out_b, st_b = rwkv_cmix_x060_infctx_prepared(
        x_b, ss_b, maa_k_b, maa_r_b, weights_b)
    out_b = jax.block_until_ready(out_b)

    ref_b, ref_st_b = _reference(x_b, ss_b, maa_k_b, maa_r_b, wk_b, wr_b, wv_b)
    err2 = float(jnp.max(jnp.abs(out_b - ref_b)))
    assert jnp.allclose(out_b, ref_b, atol=3e-2, rtol=3e-2), err2
    assert jnp.allclose(st_b, ref_st_b)

    print("KERNEL_OK")
</pallas_src>

<mosaic_0001>
module attributes {stable_mosaic.version = 11 : i64} {
  func.func @_cmix_kernel(%arg0: i32, %arg1: i32, %arg2: memref<16x128xbf16, #tpu.memory_space<vmem>>, %arg3: memref<16x128xbf16, #tpu.memory_space<vmem>>, %arg4: memref<1x128xf32, #tpu.memory_space<vmem>>, %arg5: memref<1x128xf32, #tpu.memory_space<vmem>>, %arg6: memref<128x128xbf16, #tpu.memory_space<vmem>>, %arg7: memref<128x128xbf16, #tpu.memory_space<vmem>>, %arg8: memref<128x128xbf16, #tpu.memory_space<vmem>>, %arg9: memref<16x128xf32, #tpu.memory_space<vmem>>, %arg10: memref<16x128xbf16, #tpu.memory_space<vmem>>, %arg11: memref<16x128xbf16, #tpu.memory_space<vmem>>, %arg12: memref<16x128xf32, #tpu.memory_space<vmem>>, %arg13: memref<1x16x128xf32, #tpu.memory_space<vmem>>) attributes {dimension_semantics = [#tpu.dimension_semantics<parallel>, #tpu.dimension_semantics<arbitrary>], iteration_bounds = array<i64: 1, 1>, scalar_prefetch = 0 : i64, scratch_operands = 4 : i64, tpu.core_type = #tpu.core_type<tc>, window_params = [{transform_indices = @transform_0, window_bounds = array<i64: 16, 128>}, {transform_indices = @transform_1, window_bounds = array<i64: 16, 128>}, {pipeline_mode = #tpu.pipeline_mode<synchronous>, transform_indices = @transform_2, window_bounds = array<i64: 1, 128>}, {pipeline_mode = #tpu.pipeline_mode<synchronous>, transform_indices = @transform_3, window_bounds = array<i64: 1, 128>}, {transform_indices = @transform_4, window_bounds = array<i64: 128, 128>}, {transform_indices = @transform_5, window_bounds = array<i64: 128, 128>}, {transform_indices = @transform_6, window_bounds = array<i64: 128, 128>}, {transform_indices = @transform_7, window_bounds = array<i64: 16, 128>}]} {
    %c0_i32 = arith.constant 0 : i32
    %0 = arith.cmpi eq, %arg1, %c0_i32 : i32
    %1 = arith.extui %0 : i1 to i32
    %c0_i32_0 = arith.constant 0 : i32
    %2 = arith.cmpi ne, %1, %c0_i32_0 : i32
    scf.if %2 {
      %c0_15 = arith.constant 0 : index
      %c0_16 = arith.constant 0 : index
      %21 = vector.load %arg2[%c0_15, %c0_16] : memref<16x128xbf16, #tpu.memory_space<vmem>>, vector<16x128xbf16>
      %22 = arith.extf %21 : vector<16x128xbf16> to vector<16x128xf32>
      %c0_17 = arith.constant 0 : index
      %c0_18 = arith.constant 0 : index
      %23 = vector.load %arg3[%c0_17, %c0_18] : memref<16x128xbf16, #tpu.memory_space<vmem>>, vector<16x128xbf16>
      %24 = arith.extf %23 : vector<16x128xbf16> to vector<16x128xf32>
      %25 = arith.subf %24, %22 : vector<16x128xf32>
      %c0_19 = arith.constant 0 : index
      %c0_20 = arith.constant 0 : index
      %26 = vector.load %arg4[%c0_19, %c0_20] : memref<1x128xf32, #tpu.memory_space<vmem>>, vector<1x128xf32>
      %27 = vector.broadcast %26 : vector<1x128xf32> to vector<16x128xf32>
      %28 = arith.mulf %25, %27 : vector<16x128xf32>
      %29 = arith.addf %22, %28 : vector<16x128xf32>
      %30 = arith.truncf %29 : vector<16x128xf32> to vector<16x128xbf16>
      %c0_21 = arith.constant 0 : index
      %c0_22 = arith.constant 0 : index
      %31 = vector.load %arg10[%c0_21, %c0_22] : memref<16x128xbf16, #tpu.memory_space<vmem>>, vector<16x128xbf16>
      tpu.vector_store %arg10[%c0_21, %c0_22], %30 {strides = array<i32>} : memref<16x128xbf16, #tpu.memory_space<vmem>>, vector<16x128xbf16>,
      %c0_23 = arith.constant 0 : index
      %c0_24 = arith.constant 0 : index
      %32 = vector.load %arg5[%c0_23, %c0_24] : memref<1x128xf32, #tpu.memory_space<vmem>>, vector<1x128xf32>
      %33 = vector.broadcast %32 : vector<1x128xf32> to vector<16x128xf32>
      %34 = arith.mulf %25, %33 : vector<16x128xf32>
      %35 = arith.addf %22, %34 : vector<16x128xf32>
      %36 = arith.truncf %35 : vector<16x128xf32> to vector<16x128xbf16>
      %c0_25 = arith.constant 0 : index
      %c0_26 = arith.constant 0 : index
      %37 = vector.load %arg11[%c0_25, %c0_26] : memref<16x128xbf16, #tpu.memory_space<vmem>>, vector<16x128xbf16>
      tpu.vector_store %arg11[%c0_25, %c0_26], %36 {strides = array<i32>} : memref<16x128xbf16, #tpu.memory_space<vmem>>, vector<16x128xbf16>,
      %cst_27 = arith.constant 0.000000e+00 : f32
      %38 = vector.broadcast %cst_27 : f32 to vector<16x128xf32>
      %c0_28 = arith.constant 0 : index
      %c0_29 = arith.constant 0 : index
      %39 = vector.load %arg12[%c0_28, %c0_29] : memref<16x128xf32, #tpu.memory_space<vmem>>, vector<16x128xf32>
      tpu.vector_store %arg12[%c0_28, %c0_29], %38 {strides = array<i32>} : memref<16x128xf32, #tpu.memory_space<vmem>>, vector<16x128xf32>,
    } else {
    }
    %c0 = arith.constant 0 : index
    %c0_1 = arith.constant 0 : index
    %3 = vector.load %arg10[%c0, %c0_1] : memref<16x128xbf16, #tpu.memory_space<vmem>>, vector<16x128xbf16>
    %c0_2 = arith.constant 0 : index
    %c0_3 = arith.constant 0 : index
    %4 = vector.load %arg6[%c0_2, %c0_3] : memref<128x128xbf16, #tpu.memory_space<vmem>>, vector<128x128xbf16>
    %cst = arith.constant dense<0.000000e+00> : vector<16x128xf32>
    %5 = tpu.matmul %3, %4, %cst {dimension_numbers = #tpu.dot_dimension_numbers<[1], [0], [0], [1], [0, 0, 1, 1], [], []>} : vector<16x128xbf16>, vector<128x128xbf16>, vector<16x128xf32> -> vector<16x128xf32>
    %cst_4 = arith.constant 0.000000e+00 : f32
    %6 = vector.broadcast %cst_4 : f32 to vector<16x128xf32>
    %7 = arith.maximumf %5, %6 : vector<16x128xf32>
    %8 = arith.mulf %7, %7 : vector<16x128xf32>
    %c0_5 = arith.constant 0 : index
    %c0_6 = arith.constant 0 : index
    %9 = vector.load %arg12[%c0_5, %c0_6] : memref<16x128xf32, #tpu.memory_space<vmem>>, vector<16x128xf32>
    %10 = arith.truncf %8 : vector<16x128xf32> to vector<16x128xbf16>
    %c0_7 = arith.constant 0 : index
    %c0_8 = arith.constant 0 : index
    %11 = vector.load %arg8[%c0_7, %c0_8] : memref<128x128xbf16, #tpu.memory_space<vmem>>, vector<128x128xbf16>
    %cst_9 = arith.constant dense<0.000000e+00> : vector<16x128xf32>
    %12 = tpu.matmul %10, %11, %cst_9 {dimension_numbers = #tpu.dot_dimension_numbers<[1], [0], [0], [1], [0, 0, 1, 1], [], []>} : vector<16x128xbf16>, vector<128x128xbf16>, vector<16x128xf32> -> vector<16x128xf32>
    %13 = arith.addf %9, %12 : vector<16x128xf32>
    %c0_10 = arith.constant 0 : index
    %c0_11 = arith.constant 0 : index
    %14 = vector.load %arg12[%c0_10, %c0_11] : memref<16x128xf32, #tpu.memory_space<vmem>>, vector<16x128xf32>
    tpu.vector_store %arg12[%c0_10, %c0_11], %13 {strides = array<i32>} : memref<16x128xf32, #tpu.memory_space<vmem>>, vector<16x128xf32>,
    %c1_i32 = arith.constant 1 : i32
    %15 = arith.cmpi slt, %arg1, %c1_i32 : i32
    %16 = arith.extui %15 : i1 to i32
    %c0_i32_12 = arith.constant 0 : i32
    %17 = arith.cmpi ne, %16, %c0_i32_12 : i32
    scf.if %17 {
      %c0_15 = arith.constant 0 : index
      %c0_16 = arith.constant 0 : index
      %21 = vector.load %arg11[%c0_15, %c0_16] : memref<16x128xbf16, #tpu.memory_space<vmem>>, vector<16x128xbf16>
      %c0_17 = arith.constant 0 : index
      %c0_18 = arith.constant 0 : index
      %22 = vector.load %arg7[%c0_17, %c0_18] : memref<128x128xbf16, #tpu.memory_space<vmem>>, vector<128x128xbf16>
      %cst_19 = arith.constant dense<0.000000e+00> : vector<16x128xf32>
      %23 = tpu.matmul %21, %22, %cst_19 {dimension_numbers = #tpu.dot_dimension_numbers<[1], [0], [0], [1], [0, 0, 1, 1], [], []>} : vector<16x128xbf16>, vector<128x128xbf16>, vector<16x128xf32> -> vector<16x128xf32>
      %24 = arith.index_cast %arg1 : i32 to index
      %c0_20 = arith.constant 0 : index
      %c0_21 = arith.constant 0 : index
      %25 = vector.load %arg13[%24, %c0_20, %c0_21] : memref<1x16x128xf32, #tpu.memory_space<vmem>>, vector<1x16x128xf32>
      %26 = vector.shape_cast %25 : vector<1x16x128xf32> to vector<16x128xf32>
      %27 = vector.shape_cast %23 : vector<16x128xf32> to vector<1x16x128xf32>
      tpu.vector_store %arg13[%24, %c0_20, %c0_21], %27 {strides = array<i32>} : memref<1x16x128xf32, #tpu.memory_space<vmem>>, vector<1x16x128xf32>,
    } else {
    }
    %c0_i32_13 = arith.constant 0 : i32
    %18 = arith.cmpi eq, %arg1, %c0_i32_13 : i32
    %19 = arith.extui %18 : i1 to i32
    %c0_i32_14 = arith.constant 0 : i32
    %20 = arith.cmpi ne, %19, %c0_i32_14 : i32
    scf.if %20 {
      %c0_15 = arith.constant 0 : index
      %c0_16 = arith.constant 0 : index
      %21 = vector.load %arg12[%c0_15, %c0_16] : memref<16x128xf32, #tpu.memory_space<vmem>>, vector<16x128xf32>
      %c0_17 = arith.constant 0 : index
      %c0_18 = arith.constant 0 : index
      %c0_19 = arith.constant 0 : index
      %22 = vector.load %arg13[%c0_17, %c0_18, %c0_19] : memref<1x16x128xf32, #tpu.memory_space<vmem>>, vector<1x16x128xf32>
      %23 = vector.shape_cast %22 : vector<1x16x128xf32> to vector<16x128xf32>
      %24 = arith.negf %23 : vector<16x128xf32>
      %25 = math.exp %24 : vector<16x128xf32>
      %cst_20 = arith.constant 1.000000e+00 : f32
      %26 = vector.broadcast %cst_20 : f32 to vector<16x128xf32>
      %27 = arith.addf %26, %25 : vector<16x128xf32>
      %28 = arith.divf %26, %27 : vector<16x128xf32>
      %29 = arith.mulf %28, %21 : vector<16x128xf32>
      %c0_21 = arith.constant 0 : index
      %c0_22 = arith.constant 0 : index
      %30 = vector.load %arg9[%c0_21, %c0_22] : memref<16x128xf32, #tpu.memory_space<vmem>>, vector<16x128xf32>
      tpu.vector_store %arg9[%c0_21, %c0_22], %29 {strides = array<i32>} : memref<16x128xf32, #tpu.memory_space<vmem>>, vector<16x128xf32>,
    } else {
    }
    return
  }
  func.func @transform_0(%arg0: i32, %arg1: i32) -> (i32, i32) {
    %c0_i32 = arith.constant 0 : i32
    %c0_i32_0 = arith.constant 0 : i32
    return %arg0, %c0_i32 : i32, i32
  }
  func.func @transform_1(%arg0: i32, %arg1: i32) -> (i32, i32) {
    %c0_i32 = arith.constant 0 : i32
    %c0_i32_0 = arith.constant 0 : i32
    return %arg0, %c0_i32 : i32, i32
  }
  func.func @transform_2(%arg0: i32, %arg1: i32) -> (i32, i32) {
    %c0_i32 = arith.constant 0 : i32
    %c0_i32_0 = arith.constant 0 : i32
    %c0_i32_1 = arith.constant 0 : i32
    return %c0_i32, %c0_i32_0 : i32, i32
  }
  func.func @transform_3(%arg0: i32, %arg1: i32) -> (i32, i32) {
    %c0_i32 = arith.constant 0 : i32
    %c0_i32_0 = arith.constant 0 : i32
    %c0_i32_1 = arith.constant 0 : i32
    return %c0_i32, %c0_i32_0 : i32, i32
  }
  func.func @transform_4(%arg0: i32, %arg1: i32) -> (i32, i32) {
    %c0_i32 = arith.constant 0 : i32
    %c0_i32_0 = arith.constant 0 : i32
    return %c0_i32, %arg1 : i32, i32
  }
  func.func @transform_5(%arg0: i32, %arg1: i32) -> (i32, i32) {
    %c0_i32 = arith.constant 0 : i32
    %c0_i32_0 = arith.constant 0 : i32
    return %c0_i32, %arg1 : i32, i32
  }
  func.func @transform_6(%arg0: i32, %arg1: i32) -> (i32, i32) {
    %c0_i32 = arith.constant 0 : i32
    %c0_i32_0 = arith.constant 0 : i32
    return %arg1, %c0_i32 : i32, i32
  }
  func.func @transform_7(%arg0: i32, %arg1: i32) -> (i32, i32) {
    %c0_i32 = arith.constant 0 : i32
    %c0_i32_0 = arith.constant 0 : i32
    return %arg0, %c0_i32 : i32, i32
  }
}

</mosaic_0001>

<llo_original>
// kernel: _cmix_forward.1
$region0: #{_cmix_forward.1}
  #allocation0 [shape = 'u32[]', space=smem, size = 0x4, offset = 0x4, fixed_abs, tag = 'smem constant byte address 0x4 - core index']
  #allocation1 [shape = 'u32[72,128]{1,0:T(1,128)}', space=vmem, size = 0x9000, scoped, tag = 'internal scratch']
  #allocation2 [shape = 'bf16[16,128]{1,0:T(8,128)(2,1)}', space=vmem, size = 0x1000, scoped, tag = 'scratch operand']
  #allocation3 [shape = 'bf16[16,128]{1,0:T(8,128)(2,1)}', space=vmem, size = 0x1000, scoped, tag = 'scratch operand']
  #allocation4 [shape = 'f32[16,128]{1,0:T(8,128)}', space=vmem, size = 0x2000, scoped, tag = 'scratch operand']
  #allocation5 [shape = 'f32[1,16,128]{2,1,0:T(8,128)}', space=vmem, size = 0x2000, scoped, tag = 'scratch operand']
  %s0 = inlined_call_operand.vmem [shape: bf16[16,128], index: 0, kind: input, shape index: {}]
  %s1 = inlined_call_operand.vmem [shape: bf16[16,128], index: 1, kind: input, shape index: {}]
  %s2 = inlined_call_operand.vmem [shape: f32[1,128], index: 2, kind: input, shape index: {}]
  %s3 = inlined_call_operand.vmem [shape: f32[1,128], index: 3, kind: input, shape index: {}]
  %s4 = inlined_call_operand.vmem [shape: bf16[128,128], index: 4, kind: input, shape index: {}]
  %s5 = inlined_call_operand.hbm [shape: bf16[128,128], index: 5, kind: input, shape index: {}]
  %s6 = inlined_call_operand.hbm [shape: bf16[128,128], index: 6, kind: input, shape index: {}]
  %s7 = inlined_call_operand.vmem [shape: f32[16,128], index: 7, kind: output, shape index: {}]
  %s8 = sld [smem:[#allocation0]]
  $region58: #{_cmix_forward.1} parent=0
    _
  %s10 = ssub.s32 1, %s8
  %s11 = scalar_select 0, %s10, %s8
  $region1: #{_cmix_forward.1} parent=0
    #allocation6 [shape = 'u8[32768]{0}', space=vmem, size = 0x8000, scoped, tag = 'input window, operand 5, single buffered']
    #allocation7 [shape = 's32[1]{0}', space=sflag, size = 0x4, scoped, tag = 'scoped memory for _cmix_forward.1']
    #allocation8 [shape = 'u8[32768]{0}', space=vmem, size = 0x8000, scoped, tag = 'input window, operand 6, single buffered']
    #allocation9 [shape = 's32[1]{0}', space=sflag, size = 0x4, scoped, tag = 'scoped memory for _cmix_forward.1']
    %12 = vsyncpa [#allocation7], 0
    %13 = vsyncpa [#allocation9], 0
    // Predicated region
    $region2: #{_cmix_forward.1} parent=1 // pred_check
      _
    $region3: #{_cmix_forward.1} parent=1 // pred_check_branch
      %15 = sbr.rel (0) target = $region5
    $region4: #{_cmix_forward.1} parent=1 // pred_region
      _
    $region5: #{_cmix_forward.1} parent=1 // pred_fallthru
      _
    // Predicated region
    $region6: #{_cmix_forward.1} parent=1 // pred_check
      _
    $region7: #{_cmix_forward.1} parent=1 // pred_check_branch
      %17 = sbr.rel (0) target = $region9
    $region8: #{_cmix_forward.1} parent=1 // pred_region
      _
    $region9: #{_cmix_forward.1} parent=1 // pred_fallthru
      _
    // Predicated region
    $region10: #{_cmix_forward.1} parent=1 // pred_check
      _
    $region11: #{_cmix_forward.1} parent=1 // pred_check_branch
      %19 = sbr.rel (0) target = $region13
    $region12: #{_cmix_forward.1} parent=1 // pred_region
      _
    $region13: #{_cmix_forward.1} parent=1 // pred_fallthru
      _
    // Predicated region
    $region14: #{_cmix_forward.1} parent=1 // pred_check
      _
    $region15: #{_cmix_forward.1} parent=1 // pred_check_branch
      %21 = sbr.rel (0) target = $region17
    $region16: #{_cmix_forward.1} parent=1 // pred_region
      _
    $region17: #{_cmix_forward.1} parent=1 // pred_fallthru
      _
    // Predicated region
    $region18: #{_cmix_forward.1} parent=1 // pred_check
      _
    $region19: #{_cmix_forward.1} parent=1 // pred_check_branch
      %23 = sbr.rel (0) target = $region21
    $region20: #{_cmix_forward.1} parent=1 // pred_region
      _
    $region21: #{_cmix_forward.1} parent=1 // pred_fallthru
      _
    // Predicated region
    $region22: #{_cmix_forward.1} parent=1 // pred_check
      _
    $region23: #{_cmix_forward.1} parent=1 // pred_check_branch
      %25 = sbr.rel (0) target = $region25
    $region24: #{_cmix_forward.1} parent=1 // pred_region
      %27 = vsyncadd [#allocation7], 0
      %s28 = sshll.u32 %s5, 4
      %s29 = int_to_ptr.hbm [resolvable:$true] %s28
      %s30 = sshll.u32 [#allocation6], 4
      %s31 = int_to_ptr.vmem [resolvable:$true] %s30
      %36 = dma.hbm_to_vmem [thread:$0]  %s29, 1024, %s31, [#allocation7], 64, 64, 4
    $region25: #{_cmix_forward.1} parent=1 // pred_fallthru
      _
    // Predicated region
    $region26: #{_cmix_forward.1} parent=1 // pred_check
      _
    $region27: #{_cmix_forward.1} parent=1 // pred_check_branch
      %38 = sbr.rel (0) target = $region29
    $region28: #{_cmix_forward.1} parent=1 // pred_region
      %40 = vsyncadd [#allocation9], 0
      %s41 = sshll.u32 %s6, 4
      %s42 = int_to_ptr.hbm [resolvable:$true] %s41
      %s43 = sshll.u32 [#allocation8], 4
      %s44 = int_to_ptr.vmem [resolvable:$true] %s43
      %49 = dma.hbm_to_vmem [thread:$0]  %s42, 1024, %s44, [#allocation9], 64, 64, 4
    $region29: #{_cmix_forward.1} parent=1 // pred_fallthru
      _
    // Predicated region
    $region30: #{_cmix_forward.1} parent=1 // pred_check
      _
    $region31: #{_cmix_forward.1} parent=1 // pred_check_branch
      %51 = sbr.rel (0) target = $region33
    $region32: #{_cmix_forward.1} parent=1 // pred_region
      %53 = dma.done [#allocation7], 1024
    $region33: #{_cmix_forward.1} parent=1 // pred_fallthru
      _
    // Predicated region
    $region34: #{_cmix_forward.1} parent=1 // pred_check
      _
    $region35: #{_cmix_forward.1} parent=1 // pred_check_branch
      %55 = sbr.rel (0) target = $region37
    $region36: #{_cmix_forward.1} parent=1 // pred_region
      %57 = dma.done [#allocation9], 1024
    $region37: #{_cmix_forward.1} parent=1 // pred_fallthru
      _
    %p58 = scmp.eq.s32.totalorder 0, 0
    // Predicated region
    $region38: #{_cmix_forward.1} parent=1 // pred_check
      %p59 = pneg %p58
    $region39: #{_cmix_forward.1} parent=1 // pred_check_branch
      %61 = sbr.rel (%p59) target = $region41
    $region40: #{_cmix_forward.1} parent=1 // pred_region
      %v62 = vld [vmem:[%s0] sm:$0xf]
      %v63 = vld [vmem:[%s0 + $0x4] sm:$0xf]
      %v64 = vunpack.c.l.bf16 %v62
      %v65 = vunpack.c.l.bf16 %v63
      %v66 = vld [vmem:[%s1] sm:$0xf]
      %v67 = vld [vmem:[%s1 + $0x4] sm:$0xf]
      %v68 = vunpack.c.l.bf16 %v66
      %v69 = vunpack.c.l.bf16 %v67
      %v70 = vsub.f32 %v68, %v64
      %v71 = vsub.f32 %v69, %v65
      %v72 = vld [vmem:[%s2] sm:$0x1]
      %v74 = vperm.slane %v72, 0
      %v76 = vmul.f32 %v70, %v74
      %v77 = vmul.f32 %v71, %v74
      %v78 = vadd.f32 %v64, %v76
      %v79 = vadd.f32 %v65, %v77
      %v80 = vpack.c.bf16 %v78, %v78
      %v81 = vpack.c.bf16 %v79, %v79
      %82 = vst [vmem:[#allocation2] sm:$0xf] %v80
      %83 = vst [vmem:[#allocation2 + $0x4] sm:$0xf] %v81
      %v84 = vld [vmem:[%s3] sm:$0x1]
      %v86 = vperm.slane %v84, 0
      %v88 = vmul.f32 %v70, %v86
      %v89 = vmul.f32 %v71, %v86
      %v90 = vadd.f32 %v64, %v88
      %v91 = vadd.f32 %v65, %v89
      %v92 = vpack.c.bf16 %v90, %v90
      %v93 = vpack.c.bf16 %v91, %v91
      %94 = vst [vmem:[#allocation3] sm:$0xf] %v92
      %95 = vst [vmem:[#allocation3 + $0x4] sm:$0xf] %v93
      %96 = vst [vmem:[#allocation4] sm:$0xff] 0.0
      %97 = vst [vmem:[#allocation4 + $0x8] sm:$0xff] 0.0
    $region41: #{_cmix_forward.1} parent=1 // pred_fallthru
      _
    %v98 = vld [vmem:[#allocation2] sm:$0xf]
    %v99 = vld [vmem:[#allocation2 + $0x4] sm:$0xf]
    %v100 = vld [vmem:[%s4] sm:$0xf]
    %v101 = vld [vmem:[%s4 + $0x4] sm:$0xf]
    %v102 = vld [vmem:[%s4 + $0x8] sm:$0xf]
    %v103 = vld [vmem:[%s4 + $0xc] sm:$0xf]
    %v104 = vld [vmem:[%s4 + $0x10] sm:$0xf]
    %v105 = vld [vmem:[%s4 + $0x14] sm:$0xf]
    %v106 = vld [vmem:[%s4 + $0x18] sm:$0xf]
    %v107 = vld [vmem:[%s4 + $0x1c] sm:$0xf]
    %v108 = vld [vmem:[%s4 + $0x20] sm:$0xf]
    %v109 = vld [vmem:[%s4 + $0x24] sm:$0xf]
    %v110 = vld [vmem:[%s4 + $0x28] sm:$0xf]
    %v111 = vld [vmem:[%s4 + $0x2c] sm:$0xf]
    %v112 = vld [vmem:[%s4 + $0x30] sm:$0xf]
    %v113 = vld [vmem:[%s4 + $0x34] sm:$0xf]
    %v114 = vld [vmem:[%s4 + $0x38] sm:$0xf]
    %v115 = vld [vmem:[%s4 + $0x3c] sm:$0xf]
    %v118 = vunpack.c.l.b16 %v98
    %v119 = vunpack.c.l.b16 %v99
    %v120 = vpack.c.b16 %v119, %v118
    %v138 = vunpack.c.l.b16 %v100
    %v139 = vunpack.c.l.b16 %v101
    %v140 = vunpack.c.l.b16 %v102
    %v141 = vunpack.c.l.b16 %v103
    %v142 = vunpack.c.l.b16 %v104
    %v143 = vunpack.c.l.b16 %v105
    %v144 = vunpack.c.l.b16 %v106
    %v145 = vunpack.c.l.b16 %v107
    %v146 = vunpack.c.l.b16 %v108
    %v147 = vunpack.c.l.b16 %v109
    %v148 = vunpack.c.l.b16 %v110
    %v149 = vunpack.c.l.b16 %v111
    %v150 = vunpack.c.l.b16 %v112
    %v151 = vunpack.c.l.b16 %v113
    %v152 = vunpack.c.l.b16 %v114
    %v153 = vunpack.c.l.b16 %v115
    %v154 = vpack.c.b16 %v139, %v138
    %v155 = vpack.c.b16 %v141, %v140
    %v156 = vpack.c.b16 %v143, %v142
    %v157 = vpack.c.b16 %v145, %v144
    %v158 = vpack.c.b16 %v147, %v146
    %v159 = vpack.c.b16 %v149, %v148
    %v160 = vpack.c.b16 %v151, %v150
    %v161 = vpack.c.b16 %v153, %v152
    %170 = vmatpush.bf16.msra.mxu0 %v161
    %171 = vmatpush.bf16.msra.mxu0 %v160
    %172 = vmatpush.bf16.msra.mxu0 %v159
    %173 = vmatpush.bf16.msra.mxu0 %v158
    %174 = vmatpush.bf16.msra.mxu0 %v157
    %175 = vmatpush.bf16.msra.mxu0 %v156
    %176 = vmatpush.bf16.msra.mxu0 %v155
    %177 = vmatpush.bf16.msra.mxu0 %v154
    %178 = vmatmul.bf16.gmra.mxu0 %v120
    %v179 = vpop.f32.mrf.mxu0
    %v180 = vadd.f32 0.0, %v179
    %v181 = vpop.f32.mrf.mxu0
    %v182 = vadd.f32 0.0, %v181
    %183 = vdwg.mxu0
    %v184 = vmax.f32 %v180, 0.0
    %v185 = vmax.f32 %v182, 0.0
    %v186 = vmul.f32 %v184, %v184
    %v187 = vmul.f32 %v185, %v185
    %v188 = vld [vmem:[#allocation4] sm:$0xff]
    %v189 = vld [vmem:[#allocation4 + $0x8] sm:$0xff]
    %v190 = vpack.c.bf16 %v187, %v186
    %v191 = vld [vmem:[#allocation8] sm:$0xf]
    %v192 = vld [vmem:[#allocation8 + $0x4] sm:$0xf]
    %v193 = vld [vmem:[#allocation8 + $0x8] sm:$0xf]
    %v194 = vld [vmem:[#allocation8 + $0xc] sm:$0xf]
    %v195 = vld [vmem:[#allocation8 + $0x10] sm:$0xf]
    %v196 = vld [vmem:[#allocation8 + $0x14] sm:$0xf]
    %v197 = vld [vmem:[#allocation8 + $0x18] sm:$0xf]
    %v198 = vld [vmem:[#allocation8 + $0x1c] sm:$0xf]
    %v199 = vld [vmem:[#allocation8 + $0x20] sm:$0xf]
    %v200 = vld [vmem:[#allocation8 + $0x24] sm:$0xf]
    %v201 = vld [vmem:[#allocation8 + $0x28] sm:$0xf]
    %v202 = vld [vmem:[#allocation8 + $0x2c] sm:$0xf]
    %v203 = vld [vmem:[#allocation8 + $0x30] sm:$0xf]
    %v204 = vld [vmem:[#allocation8 + $0x34] sm:$0xf]
    %v205 = vld [vmem:[#allocation8 + $0x38] sm:$0xf]
    %v206 = vld [vmem:[#allocation8 + $0x3c] sm:$0xf]
    %v223 = vunpack.c.l.b16 %v191
    %v224 = vunpack.c.l.b16 %v192
    %v225 = vunpack.c.l.b16 %v193
    %v226 = vunpack.c.l.b16 %v194
    %v227 = vunpack.c.l.b16 %v195
    %v228 = vunpack.c.l.b16 %v196
    %v229 = vunpack.c.l.b16 %v197
    %v230 = vunpack.c.l.b16 %v198
    %v231 = vunpack.c.l.b16 %v199
    %v232 = vunpack.c.l.b16 %v200
    %v233 = vunpack.c.l.b16 %v201
    %v234 = vunpack.c.l.b16 %v202
    %v235 = vunpack.c.l.b16 %v203
    %v236 = vunpack.c.l.b16 %v204
    %v237 = vunpack.c.l.b16 %v205
    %v238 = vunpack.c.l.b16 %v206
    %v239 = vpack.c.b16 %v224, %v223
    %v240 = vpack.c.b16 %v226, %v225
    %v241 = vpack.c.b16 %v228, %v227
    %v242 = vpack.c.b16 %v230, %v229
    %v243 = vpack.c.b16 %v232, %v231
    %v244 = vpack.c.b16 %v234, %v233
    %v245 = vpack.c.b16 %v236, %v235
    %v246 = vpack.c.b16 %v238, %v237
    %255 = vmatpush.bf16.msra.mxu0 %v246
    %256 = vmatpush.bf16.msra.mxu0 %v245
    %257 = vmatpush.bf16.msra.mxu0 %v244
    %258 = vmatpush.bf16.msra.mxu0 %v243
    %259 = vmatpush.bf16.msra.mxu0 %v242
    %260 = vmatpush.bf16.msra.mxu0 %v241
    %261 = vmatpush.bf16.msra.mxu0 %v240
    %262 = vmatpush.bf16.msra.mxu0 %v239
    %263 = vmatmul.bf16.gmra.mxu0 %v190
    %v264 = vpop.f32.mrf.mxu0
    %v265 = vadd.f32 0.0, %v264
    %v266 = vpop.f32.mrf.mxu0
    %v267 = vadd.f32 0.0, %v266
    %268 = vdwg.mxu0
    %v269 = vadd.f32 %v188, %v265
    %v270 = vadd.f32 %v189, %v267
    %271 = vst [vmem:[#allocation4] sm:$0xff] %v269
    %272 = vst [vmem:[#allocation4 + $0x8] sm:$0xff] %v270
    %p273 = scmp.lt.s32.totalorder 0, 1
    // Predicated region
    $region42: #{_cmix_forward.1} parent=1 // pred_check
      %p274 = pneg %p273
    $region43: #{_cmix_forward.1} parent=1 // pred_check_branch
      %276 = sbr.rel (%p274) target = $region45
    $region44: #{_cmix_forward.1} parent=1 // pred_region
      %v277 = vld [vmem:[#allocation3] sm:$0xf]
      %v278 = vld [vmem:[#allocation3 + $0x4] sm:$0xf]
      %v279 = vld [vmem:[#allocation6] sm:$0xf]
      %v280 = vld [vmem:[#allocation6 + $0x4] sm:$0xf]
      %v281 = vld [vmem:[#allocation6 + $0x8] sm:$0xf]
      %v282 = vld [vmem:[#allocation6 + $0xc] sm:$0xf]
      %v283 = vld [vmem:[#allocation6 + $0x10] sm:$0xf]
      %v284 = vld [vmem:[#allocation6 + $0x14] sm:$0xf]
      %v285 = vld [vmem:[#allocation6 + $0x18] sm:$0xf]
      %v286 = vld [vmem:[#allocation6 + $0x1c] sm:$0xf]
      %v287 = vld [vmem:[#allocation6 + $0x20] sm:$0xf]
      %v288 = vld [vmem:[#allocation6 + $0x24] sm:$0xf]
      %v289 = vld [vmem:[#allocation6 + $0x28] sm:$0xf]
      %v290 = vld [vmem:[#allocation6 + $0x2c] sm:$0xf]
      %v291 = vld [vmem:[#allocation6 + $0x30] sm:$0xf]
      %v292 = vld [vmem:[#allocation6 + $0x34] sm:$0xf]
      %v293 = vld [vmem:[#allocation6 + $0x38] sm:$0xf]
      %v294 = vld [vmem:[#allocation6 + $0x3c] sm:$0xf]
      %v297 = vunpack.c.l.b16 %v277
      %v298 = vunpack.c.l.b16 %v278
      %v299 = vpack.c.b16 %v298, %v297
      %v317 = vunpack.c.l.b16 %v279
      %v318 = vunpack.c.l.b16 %v280
      %v319 = vunpack.c.l.b16 %v281
      %v320 = vunpack.c.l.b16 %v282
      %v321 = vunpack.c.l.b16 %v283
      %v322 = vunpack.c.l.b16 %v284
      %v323 = vunpack.c.l.b16 %v285
      %v324 = vunpack.c.l.b16 %v286
      %v325 = vunpack.c.l.b16 %v287
      %v326 = vunpack.c.l.b16 %v288
      %v327 = vunpack.c.l.b16 %v289
      %v328 = vunpack.c.l.b16 %v290
      %v329 = vunpack.c.l.b16 %v291
      %v330 = vunpack.c.l.b16 %v292
      %v331 = vunpack.c.l.b16 %v293
      %v332 = vunpack.c.l.b16 %v294
      %v333 = vpack.c.b16 %v318, %v317
      %v334 = vpack.c.b16 %v320, %v319
      %v335 = vpack.c.b16 %v322, %v321
      %v336 = vpack.c.b16 %v324, %v323
      %v337 = vpack.c.b16 %v326, %v325
      %v338 = vpack.c.b16 %v328, %v327
      %v339 = vpack.c.b16 %v330, %v329
      %v340 = vpack.c.b16 %v332, %v331
      %349 = vmatpush.bf16.msra.mxu0 %v340
      %350 = vmatpush.bf16.msra.mxu0 %v339
      %351 = vmatpush.bf16.msra.mxu0 %v338
      %352 = vmatpush.bf16.msra.mxu0 %v337
      %353 = vmatpush.bf16.msra.mxu0 %v336
      %354 = vmatpush.bf16.msra.mxu0 %v335
      %355 = vmatpush.bf16.msra.mxu0 %v334
      %356 = vmatpush.bf16.msra.mxu0 %v333
      %357 = vmatmul.bf16.gmra.mxu0 %v299
      %v358 = vpop.f32.mrf.mxu0
      %v359 = vadd.f32 0.0, %v358
      %v360 = vpop.f32.mrf.mxu0
      %v361 = vadd.f32 0.0, %v360
      %362 = vdwg.mxu0
      %s363 = smul.u32 0, 16
      %s364 = scalar_lea.vmem [#allocation5], %s363
      %365 = vst [vmem:[%s364] sm:$0xff] %v359
      %366 = vst [vmem:[%s364 + $0x8] sm:$0xff] %v361
    $region45: #{_cmix_forward.1} parent=1 // pred_fallthru
      _
    // Predicated region
    $region46: #{_cmix_forward.1} parent=1 // pred_check
      %p367 = pneg %p58
    $region47: #{_cmix_forward.1} parent=1 // pred_check_branch
      %369 = sbr.rel (%p367) target = $region49
    $region48: #{_cmix_forward.1} parent=1 // pred_region
      %v370 = vld [vmem:[#allocation4] sm:$0xff]
      %v371 = vld [vmem:[#allocation4 + $0x8] sm:$0xff]
      %v372 = vld [vmem:[#allocation5] sm:$0xff]
      %v373 = vld [vmem:[#allocation5 + $0x8] sm:$0xff]
      %v374 = vxor.u32 %v372, 2147483648
      %v375 = vxor.u32 %v373, 2147483648
      %v376 = vmul.f32 %v374, 1.442695
      %v377 = vpow.pop %v376
      %v378 = vmul.f32 %v375, 1.442695
      %v379 = vpow.pop %v378
      %v380 = vadd.f32 %v377, 1.0
      %v381 = vadd.f32 %v379, 1.0
      %v382 = vrcp.pop %v380
      %v383 = vmul.f32 %v380, %v382
      %v384 = vsub.f32 1.0, %v383
      %v385 = vmul.f32 %v382, %v384
      %v386 = vadd.f32 %v382, %v385
      %vm387 = vweird.f32 %v380
      %vm388 = vweird.f32 %v382
      %vm389 = vmor %vm387, %vm388
      %v390 = vsel %vm389, %v382, %v386
      %v391 = vand.u32 2147483647, %v380
      %vm392 = vcmp.eq.f32.partialorder %v391, 8.507059e+37
      %v393 = vand.u32 %v380, 2147483648
      %v394 = vor.u32 1.1754944e-38, %v393
      %v395 = vsel %vm392, %v394, %v390
      %v396 = vmul.f32 1.0, %v395
      %v397 = vrcp.pop %v381
      %v398 = vmul.f32 %v381, %v397
      %v399 = vsub.f32 1.0, %v398
      %v400 = vmul.f32 %v397, %v399
      %v401 = vadd.f32 %v397, %v400
      %vm402 = vweird.f32 %v381
      %vm403 = vweird.f32 %v397
      %vm404 = vmor %vm402, %vm403
      %v405 = vsel %vm404, %v397, %v401
      %v406 = vand.u32 2147483647, %v381
      %vm407 = vcmp.eq.f32.partialorder %v406, 8.507059e+37
      %v408 = vand.u32 %v381, 2147483648
      %v409 = vor.u32 1.1754944e-38, %v408
      %v410 = vsel %vm407, %v409, %v405
      %v411 = vmul.f32 1.0, %v410
      %v412 = vmul.f32 %v396, %v370
      %v413 = vmul.f32 %v411, %v371
      %414 = vst [vmem:[%s7] sm:$0xff] %v412
      %415 = vst [vmem:[%s7 + $0x8] sm:$0xff] %v413
    $region49: #{_cmix_forward.1} parent=1 // pred_fallthru
      _
    // Predicated region
    $region50: #{_cmix_forward.1} parent=1 // pred_check
      _
    $region51: #{_cmix_forward.1} parent=1 // pred_check_branch
      %417 = sbr.rel (0) target = $region53
    $region52: #{_cmix_forward.1} parent=1 // pred_region
      _
    $region53: #{_cmix_forward.1} parent=1 // pred_fallthru
      _
    // Predicated region
    $region54: #{_cmix_forward.1} parent=1 // pred_check
      _
    $region55: #{_cmix_forward.1} parent=1 // pred_check_branch
      %419 = sbr.rel (0) target = $region57
    $region56: #{_cmix_forward.1} parent=1 // pred_region
      _
    $region57: #{_cmix_forward.1} parent=1 // pred_fallthru
      _
    %420 = vsyncpa [#allocation7], 1
    %421 = vsyncpa [#allocation9], 1

</llo_original>
